<compile_context>
chip_gen: v5e
topology: v5e:2x2
jax: 0.10.0
libtpu: 0.0.40
codegen_flags: <defaults>
</compile_context>

<pallas_src>
import jax
import jax.numpy as jnp
from jax.experimental import pallas as pl
from jax.experimental.pallas import tpu as pltpu


def _gaussian_final_kernel(inv_ref, mu_h_ref, sigma_h_ref, d_ref,
                           mu_ref, sigma_ref, acc_mu, acc_sig):
    # inv_ref: SMEM (2,) f32 = [-0.5/ls_mu^2, -0.5/ls_sigma^2]  (scalar prefetch)
    # mu_h_ref/sigma_h_ref: (B, tn)   d_ref: (tn, tp)   outputs: (B, tp)
    n_idx = pl.program_id(1)  # reduction (N) axis, last in grid

    @pl.when(n_idx == 0)
    def _():
        acc_mu[...] = jnp.zeros_like(acc_mu)
        acc_sig[...] = jnp.zeros_like(acc_sig)

    d = d_ref[...]
    k_mu = jnp.exp(d * inv_ref[0])     # RBF kernel tile, param 0
    k_sig = jnp.exp(d * inv_ref[1])    # RBF kernel tile, param 1

    # einsum('bij,pij->bpij').sum((2,3)) over this N-tile == (B,tn)@(tn,tp)
    acc_mu[...] += jnp.dot(mu_h_ref[...], k_mu,
                           preferred_element_type=jnp.float32)
    acc_sig[...] += jnp.dot(sigma_h_ref[...], k_sig,
                            preferred_element_type=jnp.float32)

    @pl.when(n_idx == pl.num_programs(1) - 1)
    def _():
        mu_ref[...] = acc_mu[...]
        x = acc_sig[...]
        e = jnp.exp(x)                               # single exp, reused
        sp = jnp.where(e < 1000.0, jnp.log1p(e), x)  # _log_exp overflow guard
        sigma_ref[...] = 0.01 + (1.0 - 0.1) * sp     # _force_positive


def _round_up(x, m):
    return (x + m - 1) // m * m


def gaussian_final_layer(h, dists, ls, *, tile_p=256, tile_n=1024):
    """h: (B, I, J, 2); dists: (P, I, J); ls: (2,) -> (mu, sigma) each (B, P)."""
    B, I, J, n_params = h.shape
    assert n_params == 2
    P = dists.shape[0]
    N = I * J

    # Tile sizes: multiples of 128 so all blocks are lane-aligned; keep them
    # modest so double-buffered dists tiles fit easily in v5e's 16 MiB scoped
    # VMEM and v7x's 64 MiB physical VMEM.
    tp = min(tile_p, _round_up(P, 128))
    tn = min(tile_n, _round_up(N, 128))
    P_pad = _round_up(P, tp)
    N_pad = _round_up(N, tn)
    pad_n = N_pad - N

    # One channel-major transpose of h (single HBM pass), then contiguous
    # channel slices. Zero-pad the weights along N: padded grid points then
    # contribute exactly zero regardless of the (padded) dists values.
    h_cm = jnp.moveaxis(h.reshape(B, N, 2).astype(jnp.float32), -1, 0)  # (2,B,N)
    mu_h = jnp.pad(h_cm[0], ((0, 0), (0, pad_n)))
    sigma_h = jnp.pad(h_cm[1], ((0, 0), (0, pad_n)))

    # dists as (N, P): contraction dim on sublanes, P on lanes (native MXU RHS).
    d = jnp.pad(dists.reshape(P, N).astype(jnp.float32).T,
                ((0, pad_n), (0, P_pad - P)))

    # Fold -0.5/ls^2 into a scalar once (kernel does a single mul per element).
    inv = (-0.5 / (ls.astype(jnp.float32) ** 2)).reshape(2)

    grid = (P_pad // tp, N_pad // tn)

    cost = pl.CostEstimate(
        flops=4 * B * P_pad * N_pad,                       # two (B,N)x(N,P) matmuls
        transcendentals=2 * P_pad * N_pad + B * P_pad,     # two RBF exps + epilogue
        bytes_accessed=4 * (N_pad * P_pad + 2 * B * N_pad + 2 * B * P_pad),
    )

    mu, sigma = pl.pallas_call(
        _gaussian_final_kernel,
        out_shape=(jax.ShapeDtypeStruct((B, P_pad), jnp.float32),
                   jax.ShapeDtypeStruct((B, P_pad), jnp.float32)),
        grid_spec=pltpu.PrefetchScalarGridSpec(
            num_scalar_prefetch=1,          # inv -> SMEM
            grid=grid,                      # (P tiles, N tiles); N (reduction) last
            in_specs=[
                pl.BlockSpec((B, tn), lambda i, k, inv_ref: (0, k)),   # mu_h
                pl.BlockSpec((B, tn), lambda i, k, inv_ref: (0, k)),   # sigma_h
                pl.BlockSpec((tn, tp), lambda i, k, inv_ref: (k, i)),  # dists (N,P)
            ],
            out_specs=(
                pl.BlockSpec((B, tp), lambda i, k, inv_ref: (0, i)),   # mu
                pl.BlockSpec((B, tp), lambda i, k, inv_ref: (0, i)),   # sigma
            ),
            scratch_shapes=[pltpu.VMEM((B, tp), jnp.float32),
                            pltpu.VMEM((B, tp), jnp.float32)],
        ),
        compiler_params=pltpu.CompilerParams(
            dimension_semantics=("parallel", "arbitrary")),
        cost_estimate=cost,
    )(inv, mu_h, sigma_h, d)

    return mu[:, :P], sigma[:, :P]


def _reference(h, dists, ls):
    """Pure-JAX reference mirroring the PyTorch module, for validation."""
    mu_h = h[..., 0]
    sigma_h = h[..., 1]

    def param_layer(wt, ls_k):
        kern = jnp.exp(-0.5 * dists / (ls_k ** 2))          # (P, I, J)
        vals = jnp.einsum('bij,pij->bpij', wt, kern)
        return jnp.sum(vals, axis=(2, 3))                    # (B, P)

    mu = param_layer(mu_h, ls[0])
    x = param_layer(sigma_h, ls[1])
    sp = jnp.where(jnp.exp(x) < 1000.0, jnp.log1p(jnp.exp(x)), x)
    sigma = 0.01 + 0.9 * sp
    return mu, sigma


if __name__ == "__main__":
    key = jax.random.PRNGKey(0)
    k_h, k_d = jax.random.split(key)

    B, I, J, P = 2, 16, 16, 8
    init_ls = 0.5  # deterministic parameter init (same for both ParamLayers)

    h = jax.random.normal(k_h, (B, I, J, 2), dtype=jnp.float32)
    dists = jax.random.uniform(k_d, (P, I, J), dtype=jnp.float32) * 4.0  # squared dists >= 0
    ls = jnp.array([init_ls, init_ls], dtype=jnp.float32)

    mu, sigma = gaussian_final_layer(h, dists, ls)
    jax.block_until_ready((mu, sigma))

    mu_ref, sigma_ref = _reference(h, dists, ls)
    assert jnp.allclose(mu, mu_ref, atol=1e-4, rtol=1e-4), "mu mismatch"
    assert jnp.allclose(sigma, sigma_ref, atol=1e-4, rtol=1e-4), "sigma mismatch"

    print("KERNEL_OK")
</pallas_src>

<mosaic_0001>
module attributes {stable_mosaic.version = 11 : i64} {
  func.func @_gaussian_final_kernel(%arg0: i32, %arg1: i32, %arg2: memref<2xf32, #tpu.memory_space<smem>>, %arg3: memref<2x256xf32, #tpu.memory_space<vmem>>, %arg4: memref<2x256xf32, #tpu.memory_space<vmem>>, %arg5: memref<256x128xf32, #tpu.memory_space<vmem>>, %arg6: memref<2x128xf32, #tpu.memory_space<vmem>>, %arg7: memref<2x128xf32, #tpu.memory_space<vmem>>, %arg8: memref<2x128xf32, #tpu.memory_space<vmem>>, %arg9: memref<2x128xf32, #tpu.memory_space<vmem>>) attributes {dimension_semantics = [#tpu.dimension_semantics<parallel>, #tpu.dimension_semantics<arbitrary>], iteration_bounds = array<i64: 1, 1>, scalar_prefetch = 1 : i64, scratch_operands = 2 : i64, tpu.core_type = #tpu.core_type<tc>, window_params = [{transform_indices = @transform_0, window_bounds = array<i64: 2, 256>}, {transform_indices = @transform_1, window_bounds = array<i64: 2, 256>}, {transform_indices = @transform_2, window_bounds = array<i64: 256, 128>}, {transform_indices = @transform_3, window_bounds = array<i64: 2, 128>}, {transform_indices = @transform_4, window_bounds = array<i64: 2, 128>}]} {
    %c0_i32 = arith.constant 0 : i32
    %0 = arith.cmpi eq, %arg1, %c0_i32 : i32
    %1 = arith.extui %0 : i1 to i32
    %c0_i32_0 = arith.constant 0 : i32
    %2 = arith.cmpi ne, %1, %c0_i32_0 : i32
    scf.if %2 {
      %cst_18 = arith.constant 0.000000e+00 : f32
      %25 = vector.broadcast %cst_18 : f32 to vector<2x128xf32>
      %c0_19 = arith.constant 0 : index
      %c0_20 = arith.constant 0 : index
      %26 = vector.load %arg8[%c0_19, %c0_20] : memref<2x128xf32, #tpu.memory_space<vmem>>, vector<2x128xf32>
      tpu.vector_store %arg8[%c0_19, %c0_20], %25 {strides = array<i32>} : memref<2x128xf32, #tpu.memory_space<vmem>>, vector<2x128xf32>,
      %cst_21 = arith.constant 0.000000e+00 : f32
      %27 = vector.broadcast %cst_21 : f32 to vector<2x128xf32>
      %c0_22 = arith.constant 0 : index
      %c0_23 = arith.constant 0 : index
      %28 = vector.load %arg9[%c0_22, %c0_23] : memref<2x128xf32, #tpu.memory_space<vmem>>, vector<2x128xf32>
      tpu.vector_store %arg9[%c0_22, %c0_23], %27 {strides = array<i32>} : memref<2x128xf32, #tpu.memory_space<vmem>>, vector<2x128xf32>,
    } else {
    }
    %c0 = arith.constant 0 : index
    %c0_1 = arith.constant 0 : index
    %3 = vector.load %arg5[%c0, %c0_1] : memref<256x128xf32, #tpu.memory_space<vmem>>, vector<256x128xf32>
    %c0_2 = arith.constant 0 : index
    %4 = memref.load %arg2[%c0_2] : memref<2xf32, #tpu.memory_space<smem>>
    %5 = vector.broadcast %4 : f32 to vector<256x128xf32>
    %6 = arith.mulf %3, %5 : vector<256x128xf32>
    %7 = math.exp %6 : vector<256x128xf32>
    %c1 = arith.constant 1 : index
    %8 = memref.load %arg2[%c1] : memref<2xf32, #tpu.memory_space<smem>>
    %9 = vector.broadcast %8 : f32 to vector<256x128xf32>
    %10 = arith.mulf %3, %9 : vector<256x128xf32>
    %11 = math.exp %10 : vector<256x128xf32>
    %c0_3 = arith.constant 0 : index
    %c0_4 = arith.constant 0 : index
    %12 = vector.load %arg8[%c0_3, %c0_4] : memref<2x128xf32, #tpu.memory_space<vmem>>, vector<2x128xf32>
    %c0_5 = arith.constant 0 : index
    %c0_6 = arith.constant 0 : index
    %13 = vector.load %arg3[%c0_5, %c0_6] : memref<2x256xf32, #tpu.memory_space<vmem>>, vector<2x256xf32>
    %cst = arith.constant dense<0.000000e+00> : vector<2x128xf32>
    %14 = tpu.matmul %13, %7, %cst {dimension_numbers = #tpu.dot_dimension_numbers<[1], [0], [0], [1], [0, 0, 1, 1], [], []>} : vector<2x256xf32>, vector<256x128xf32>, vector<2x128xf32> -> vector<2x128xf32>
    %15 = arith.addf %12, %14 : vector<2x128xf32>
    %c0_7 = arith.constant 0 : index
    %c0_8 = arith.constant 0 : index
    %16 = vector.load %arg8[%c0_7, %c0_8] : memref<2x128xf32, #tpu.memory_space<vmem>>, vector<2x128xf32>
    tpu.vector_store %arg8[%c0_7, %c0_8], %15 {strides = array<i32>} : memref<2x128xf32, #tpu.memory_space<vmem>>, vector<2x128xf32>,
    %c0_9 = arith.constant 0 : index
    %c0_10 = arith.constant 0 : index
    %17 = vector.load %arg9[%c0_9, %c0_10] : memref<2x128xf32, #tpu.memory_space<vmem>>, vector<2x128xf32>
    %c0_11 = arith.constant 0 : index
    %c0_12 = arith.constant 0 : index
    %18 = vector.load %arg4[%c0_11, %c0_12] : memref<2x256xf32, #tpu.memory_space<vmem>>, vector<2x256xf32>
    %cst_13 = arith.constant dense<0.000000e+00> : vector<2x128xf32>
    %19 = tpu.matmul %18, %11, %cst_13 {dimension_numbers = #tpu.dot_dimension_numbers<[1], [0], [0], [1], [0, 0, 1, 1], [], []>} : vector<2x256xf32>, vector<256x128xf32>, vector<2x128xf32> -> vector<2x128xf32>
    %20 = arith.addf %17, %19 : vector<2x128xf32>
    %c0_14 = arith.constant 0 : index
    %c0_15 = arith.constant 0 : index
    %21 = vector.load %arg9[%c0_14, %c0_15] : memref<2x128xf32, #tpu.memory_space<vmem>>, vector<2x128xf32>
    tpu.vector_store %arg9[%c0_14, %c0_15], %20 {strides = array<i32>} : memref<2x128xf32, #tpu.memory_space<vmem>>, vector<2x128xf32>,
    %c0_i32_16 = arith.constant 0 : i32
    %22 = arith.cmpi eq, %arg1, %c0_i32_16 : i32
    %23 = arith.extui %22 : i1 to i32
    %c0_i32_17 = arith.constant 0 : i32
    %24 = arith.cmpi ne, %23, %c0_i32_17 : i32
    scf.if %24 {
      %c0_18 = arith.constant 0 : index
      %c0_19 = arith.constant 0 : index
      %25 = vector.load %arg8[%c0_18, %c0_19] : memref<2x128xf32, #tpu.memory_space<vmem>>, vector<2x128xf32>
      %c0_20 = arith.constant 0 : index
      %c0_21 = arith.constant 0 : index
      %26 = vector.load %arg6[%c0_20, %c0_21] : memref<2x128xf32, #tpu.memory_space<vmem>>, vector<2x128xf32>
      tpu.vector_store %arg6[%c0_20, %c0_21], %25 {strides = array<i32>} : memref<2x128xf32, #tpu.memory_space<vmem>>, vector<2x128xf32>,
      %c0_22 = arith.constant 0 : index
      %c0_23 = arith.constant 0 : index
      %27 = vector.load %arg9[%c0_22, %c0_23] : memref<2x128xf32, #tpu.memory_space<vmem>>, vector<2x128xf32>
      %28 = math.exp %27 : vector<2x128xf32>
      %cst_24 = arith.constant 1.000000e+03 : f32
      %29 = vector.broadcast %cst_24 : f32 to vector<2x128xf32>
      %30 = arith.cmpf olt, %28, %29 : vector<2x128xf32>
      %31 = math.log1p %28 : vector<2x128xf32>
      %32 = arith.select %30, %31, %27 : vector<2x128xi1>, vector<2x128xf32>
      %cst_25 = arith.constant 0.899999976 : f32
      %33 = vector.broadcast %cst_25 : f32 to vector<2x128xf32>
      %34 = arith.mulf %33, %32 : vector<2x128xf32>
      %cst_26 = arith.constant 0.00999999977 : f32
      %35 = vector.broadcast %cst_26 : f32 to vector<2x128xf32>
      %36 = arith.addf %35, %34 : vector<2x128xf32>
      %c0_27 = arith.constant 0 : index
      %c0_28 = arith.constant 0 : index
      %37 = vector.load %arg7[%c0_27, %c0_28] : memref<2x128xf32, #tpu.memory_space<vmem>>, vector<2x128xf32>
      tpu.vector_store %arg7[%c0_27, %c0_28], %36 {strides = array<i32>} : memref<2x128xf32, #tpu.memory_space<vmem>>, vector<2x128xf32>,
    } else {
    }
    return
  }
  func.func @transform_0(%arg0: i32, %arg1: i32, %arg2: memref<2xf32, #tpu.memory_space<smem>>) -> (i32, i32) {
    %c0_i32 = arith.constant 0 : i32
    %c0_i32_0 = arith.constant 0 : i32
    return %c0_i32, %arg1 : i32, i32
  }
  func.func @transform_1(%arg0: i32, %arg1: i32, %arg2: memref<2xf32, #tpu.memory_space<smem>>) -> (i32, i32) {
    %c0_i32 = arith.constant 0 : i32
    %c0_i32_0 = arith.constant 0 : i32
    return %c0_i32, %arg1 : i32, i32
  }
  func.func @transform_2(%arg0: i32, %arg1: i32, %arg2: memref<2xf32, #tpu.memory_space<smem>>) -> (i32, i32) {
    %c0_i32 = arith.constant 0 : i32
    return %arg1, %arg0 : i32, i32
  }
  func.func @transform_3(%arg0: i32, %arg1: i32, %arg2: memref<2xf32, #tpu.memory_space<smem>>) -> (i32, i32) {
    %c0_i32 = arith.constant 0 : i32
    %c0_i32_0 = arith.constant 0 : i32
    return %c0_i32, %arg0 : i32, i32
  }
  func.func @transform_4(%arg0: i32, %arg1: i32, %arg2: memref<2xf32, #tpu.memory_space<smem>>) -> (i32, i32) {
    %c0_i32 = arith.constant 0 : i32
    %c0_i32_0 = arith.constant 0 : i32
    return %c0_i32, %arg0 : i32, i32
  }
}

</mosaic_0001>

<llo_original>
// kernel: tpu_custom_call.1
$region0: #{tpu_custom_call.1}
  #allocation0 [shape = 'u32[]', space=smem, size = 0x4, offset = 0x4, fixed_abs, tag = 'smem constant byte address 0x4 - core index']
  #allocation1 [shape = 'u32[72,128]{1,0:T(1,128)}', space=vmem, size = 0x9000, scoped, tag = 'internal scratch']
  #allocation2 [shape = 'f32[2,128]{1,0:T(2,128)}', space=vmem, size = 0x400, scoped, tag = 'scratch operand']
  #allocation3 [shape = 'f32[2,128]{1,0:T(2,128)}', space=vmem, size = 0x400, scoped, tag = 'scratch operand']
  #allocation4 [shape = 's32[1]{0}', space=sflag, size = 0x4, scoped, tag = 'scoped memory for tpu_custom_call.1']
  #allocation5 [shape = 'u8[512]{0}', space=smem, size = 0x200, scoped, tag = 'prefetched SMEM operand 0']
  %s0 = inlined_call_operand.hbm [shape: f32[2], index: 0, kind: input, shape index: {}]
  %s1 = inlined_call_operand.hbm [shape: f32[2,256], index: 1, kind: input, shape index: {}]
  %s2 = inlined_call_operand.hbm [shape: f32[2,256], index: 2, kind: input, shape index: {}]
  %s3 = inlined_call_operand.hbm [shape: f32[256,128], index: 3, kind: input, shape index: {}]
  %s4 = inlined_call_operand.hbm [shape: f32[2,128], index: 4, kind: output, shape index: {0}]
  %s5 = inlined_call_operand.hbm [shape: f32[2,128], index: 5, kind: output, shape index: {1}]
  %6 = xla_tuple %s4, %s5
  %s7 = sld [smem:[#allocation0]]
  $region50: #{tpu_custom_call.1} parent=0
    _
  %s9 = ssub.s32 1, %s7
  %s10 = scalar_select 0, %s9, %s7
  %s12 = sshll.u32 %s0, 4
  %s13 = int_to_ptr.hbm [resolvable:$true] %s12
  %15 = dma.hbm_to_smem %s13, 16, [#allocation5], [#allocation4]
  %17 = dma.done [#allocation4], 16
  %18 = sfence
  $region1: #{tpu_custom_call.1} parent=0
    #allocation6 [shape = 'u8[2048]{0}', space=vmem, size = 0x800, scoped, tag = 'input window, operand 1, single buffered']
    #allocation7 [shape = 's32[1]{0}', space=sflag, size = 0x4, scoped, tag = 'scoped memory for tpu_custom_call.1']
    #allocation8 [shape = 's32[1]{0}', space=sflag, size = 0x4, scoped, tag = 'scoped memory for tpu_custom_call.1']
    #allocation9 [shape = 'u8[2048]{0}', space=vmem, size = 0x800, scoped, tag = 'input window, operand 2, single buffered']
    #allocation10 [shape = 's32[1]{0}', space=sflag, size = 0x4, scoped, tag = 'scoped memory for tpu_custom_call.1']
    #allocation11 [shape = 'u8[131072]{0}', space=vmem, size = 0x20000, scoped, tag = 'input window, operand 3, single buffered']
    #allocation12 [shape = 'u8[1024]{0}', space=vmem, size = 0x400, scoped, tag = 'output window, operand 0, single buffered']
    #allocation13 [shape = 'u8[1024]{0}', space=vmem, size = 0x400, scoped, tag = 'output window, operand 1, single buffered']
    #allocation14 [shape = 's32[1]{0}', space=sflag, size = 0x4, scoped, tag = 'scoped memory for tpu_custom_call.1']
    %19 = vsyncpa [#allocation7], 0
    %20 = vsyncpa [#allocation10], 0
    %21 = vsyncpa [#allocation8], 0
    %22 = vsyncpa [#allocation14], 0
    // Predicated region
    $region2: #{tpu_custom_call.1} parent=1 // pred_check
      _
    $region3: #{tpu_custom_call.1} parent=1 // pred_check_branch
      %24 = sbr.rel (0) target = $region5
    $region4: #{tpu_custom_call.1} parent=1 // pred_region
      %26 = vsyncadd [#allocation7], 0
      %s28 = sshll.u32 %s1, 4
      %s29 = int_to_ptr.hbm [resolvable:$true] %s28
      %s30 = sshll.u32 [#allocation6], 4
      %s31 = int_to_ptr.vmem [resolvable:$true] %s30
      %33 = dma.hbm_to_vmem [thread:$0]  %s29, 64, %s31, [#allocation7]
    $region5: #{tpu_custom_call.1} parent=1 // pred_fallthru
      _
    // Predicated region
    $region6: #{tpu_custom_call.1} parent=1 // pred_check
      _
    $region7: #{tpu_custom_call.1} parent=1 // pred_check_branch
      %35 = sbr.rel (0) target = $region9
    $region8: #{tpu_custom_call.1} parent=1 // pred_region
      %37 = vsyncadd [#allocation10], 0
      %s39 = sshll.u32 %s2, 4
      %s40 = int_to_ptr.hbm [resolvable:$true] %s39
      %s41 = sshll.u32 [#allocation9], 4
      %s42 = int_to_ptr.vmem [resolvable:$true] %s41
      %44 = dma.hbm_to_vmem [thread:$0]  %s40, 64, %s42, [#allocation10]
    $region9: #{tpu_custom_call.1} parent=1 // pred_fallthru
      _
    // Predicated region
    $region10: #{tpu_custom_call.1} parent=1 // pred_check
      _
    $region11: #{tpu_custom_call.1} parent=1 // pred_check_branch
      %46 = sbr.rel (0) target = $region13
    $region12: #{tpu_custom_call.1} parent=1 // pred_region
      %48 = vsyncadd [#allocation10], 0
      %s49 = sshll.u32 %s3, 4
      %s50 = int_to_ptr.hbm [resolvable:$true] %s49
      %s51 = sshll.u32 [#allocation11], 4
      %s52 = int_to_ptr.vmem [resolvable:$true] %s51
      %57 = dma.hbm_to_vmem [thread:$0]  %s50, 4096, %s52, [#allocation10], 128, 128, 8
    $region13: #{tpu_custom_call.1} parent=1 // pred_fallthru
      _
    // Predicated region
    $region14: #{tpu_custom_call.1} parent=1 // pred_check
      _
    $region15: #{tpu_custom_call.1} parent=1 // pred_check_branch
      %59 = sbr.rel (0) target = $region17
    $region16: #{tpu_custom_call.1} parent=1 // pred_region
      %61 = dma.done [#allocation7], 64
    $region17: #{tpu_custom_call.1} parent=1 // pred_fallthru
      _
    // Predicated region
    $region18: #{tpu_custom_call.1} parent=1 // pred_check
      _
    $region19: #{tpu_custom_call.1} parent=1 // pred_check_branch
      %63 = sbr.rel (0) target = $region21
    $region20: #{tpu_custom_call.1} parent=1 // pred_region
      %65 = dma.done [#allocation10], 64
    $region21: #{tpu_custom_call.1} parent=1 // pred_fallthru
      _
    // Predicated region
    $region22: #{tpu_custom_call.1} parent=1 // pred_check
      _
    $region23: #{tpu_custom_call.1} parent=1 // pred_check_branch
      %67 = sbr.rel (0) target = $region25
    $region24: #{tpu_custom_call.1} parent=1 // pred_region
      %69 = dma.done [#allocation10], 4096
    $region25: #{tpu_custom_call.1} parent=1 // pred_fallthru
      _
    %p70 = scmp.eq.s32.totalorder 0, 0
    // Predicated region
    $region26: #{tpu_custom_call.1} parent=1 // pred_check
      %p71 = pneg %p70
    $region27: #{tpu_custom_call.1} parent=1 // pred_check_branch
      %73 = sbr.rel (%p71) target = $region29
    $region28: #{tpu_custom_call.1} parent=1 // pred_region
      %74 = vst [vmem:[#allocation2] sm:$0x3] 0.0
      %75 = vst [vmem:[#allocation3] sm:$0x3] 0.0
    $region29: #{tpu_custom_call.1} parent=1 // pred_fallthru
      _
    %v76 = vld [vmem:[#allocation11] sm:$0xff]
    %v77 = vld [vmem:[#allocation11 + $0x8] sm:$0xff]
    %v78 = vld [vmem:[#allocation11 + $0x10] sm:$0xff]
    %v79 = vld [vmem:[#allocation11 + $0x18] sm:$0xff]
    %v80 = vld [vmem:[#allocation11 + $0x20] sm:$0xff]
    %v81 = vld [vmem:[#allocation11 + $0x28] sm:$0xff]
    %v82 = vld [vmem:[#allocation11 + $0x30] sm:$0xff]
    %v83 = vld [vmem:[#allocation11 + $0x38] sm:$0xff]
    %v84 = vld [vmem:[#allocation11 + $0x40] sm:$0xff]
    %v85 = vld [vmem:[#allocation11 + $0x48] sm:$0xff]
    %v86 = vld [vmem:[#allocation11 + $0x50] sm:$0xff]
    %v87 = vld [vmem:[#allocation11 + $0x58] sm:$0xff]
    %v88 = vld [vmem:[#allocation11 + $0x60] sm:$0xff]
    %v89 = vld [vmem:[#allocation11 + $0x68] sm:$0xff]
    %v90 = vld [vmem:[#allocation11 + $0x70] sm:$0xff]
    %v91 = vld [vmem:[#allocation11 + $0x78] sm:$0xff]
    %v92 = vld [vmem:[#allocation11 + $0x80] sm:$0xff]
    %v93 = vld [vmem:[#allocation11 + $0x88] sm:$0xff]
    %v94 = vld [vmem:[#allocation11 + $0x90] sm:$0xff]
    %v95 = vld [vmem:[#allocation11 + $0x98] sm:$0xff]
    %v96 = vld [vmem:[#allocation11 + $0xa0] sm:$0xff]
    %v97 = vld [vmem:[#allocation11 + $0xa8] sm:$0xff]
    %v98 = vld [vmem:[#allocation11 + $0xb0] sm:$0xff]
    %v99 = vld [vmem:[#allocation11 + $0xb8] sm:$0xff]
    %v100 = vld [vmem:[#allocation11 + $0xc0] sm:$0xff]
    %v101 = vld [vmem:[#allocation11 + $0xc8] sm:$0xff]
    %v102 = vld [vmem:[#allocation11 + $0xd0] sm:$0xff]
    %v103 = vld [vmem:[#allocation11 + $0xd8] sm:$0xff]
    %v104 = vld [vmem:[#allocation11 + $0xe0] sm:$0xff]
    %v105 = vld [vmem:[#allocation11 + $0xe8] sm:$0xff]
    %v106 = vld [vmem:[#allocation11 + $0xf0] sm:$0xff]
    %v107 = vld [vmem:[#allocation11 + $0xf8] sm:$0xff]
    %s108 = sld [smem:[#allocation5]]
    %v109 = vstv %s108
    %v110 = vmul.f32 %v76, %v109
    %v111 = vmul.f32 %v77, %v109
    %v112 = vmul.f32 %v78, %v109
    %v113 = vmul.f32 %v79, %v109
    %v114 = vmul.f32 %v80, %v109
    %v115 = vmul.f32 %v81, %v109
    %v116 = vmul.f32 %v82, %v109
    %v117 = vmul.f32 %v83, %v109
    %v118 = vmul.f32 %v84, %v109
    %v119 = vmul.f32 %v85, %v109
    %v120 = vmul.f32 %v86, %v109
    %v121 = vmul.f32 %v87, %v109
    %v122 = vmul.f32 %v88, %v109
    %v123 = vmul.f32 %v89, %v109
    %v124 = vmul.f32 %v90, %v109
    %v125 = vmul.f32 %v91, %v109
    %v126 = vmul.f32 %v92, %v109
    %v127 = vmul.f32 %v93, %v109
    %v128 = vmul.f32 %v94, %v109
    %v129 = vmul.f32 %v95, %v109
    %v130 = vmul.f32 %v96, %v109
    %v131 = vmul.f32 %v97, %v109
    %v132 = vmul.f32 %v98, %v109
    %v133 = vmul.f32 %v99, %v109
    %v134 = vmul.f32 %v100, %v109
    %v135 = vmul.f32 %v101, %v109
    %v136 = vmul.f32 %v102, %v109
    %v137 = vmul.f32 %v103, %v109
    %v138 = vmul.f32 %v104, %v109
    %v139 = vmul.f32 %v105, %v109
    %v140 = vmul.f32 %v106, %v109
    %v141 = vmul.f32 %v107, %v109
    %v142 = vmul.f32 %v110, 1.442695
    %v143 = vpow.pop %v142
    %v144 = vmul.f32 %v111, 1.442695
    %v145 = vpow.pop %v144
    %v146 = vmul.f32 %v112, 1.442695
    %v147 = vpow.pop %v146
    %v148 = vmul.f32 %v113, 1.442695
    %v149 = vpow.pop %v148
    %v150 = vmul.f32 %v114, 1.442695
    %v151 = vpow.pop %v150
    %v152 = vmul.f32 %v115, 1.442695
    %v153 = vpow.pop %v152
    %v154 = vmul.f32 %v116, 1.442695
    %v155 = vpow.pop %v154
    %v156 = vmul.f32 %v117, 1.442695
    %v157 = vpow.pop %v156
    %v158 = vmul.f32 %v118, 1.442695
    %v159 = vpow.pop %v158
    %v160 = vmul.f32 %v119, 1.442695
    %v161 = vpow.pop %v160
    %v162 = vmul.f32 %v120, 1.442695
    %v163 = vpow.pop %v162
    %v164 = vmul.f32 %v121, 1.442695
    %v165 = vpow.pop %v164
    %v166 = vmul.f32 %v122, 1.442695
    %v167 = vpow.pop %v166
    %v168 = vmul.f32 %v123, 1.442695
    %v169 = vpow.pop %v168
    %v170 = vmul.f32 %v124, 1.442695
    %v171 = vpow.pop %v170
    %v172 = vmul.f32 %v125, 1.442695
    %v173 = vpow.pop %v172
    %v174 = vmul.f32 %v126, 1.442695
    %v175 = vpow.pop %v174
    %v176 = vmul.f32 %v127, 1.442695
    %v177 = vpow.pop %v176
    %v178 = vmul.f32 %v128, 1.442695
    %v179 = vpow.pop %v178
    %v180 = vmul.f32 %v129, 1.442695
    %v181 = vpow.pop %v180
    %v182 = vmul.f32 %v130, 1.442695
    %v183 = vpow.pop %v182
    %v184 = vmul.f32 %v131, 1.442695
    %v185 = vpow.pop %v184
    %v186 = vmul.f32 %v132, 1.442695
    %v187 = vpow.pop %v186
    %v188 = vmul.f32 %v133, 1.442695
    %v189 = vpow.pop %v188
    %v190 = vmul.f32 %v134, 1.442695
    %v191 = vpow.pop %v190
    %v192 = vmul.f32 %v135, 1.442695
    %v193 = vpow.pop %v192
    %v194 = vmul.f32 %v136, 1.442695
    %v195 = vpow.pop %v194
    %v196 = vmul.f32 %v137, 1.442695
    %v197 = vpow.pop %v196
    %v198 = vmul.f32 %v138, 1.442695
    %v199 = vpow.pop %v198
    %v200 = vmul.f32 %v139, 1.442695
    %v201 = vpow.pop %v200
    %v202 = vmul.f32 %v140, 1.442695
    %v203 = vpow.pop %v202
    %v204 = vmul.f32 %v141, 1.442695
    %v205 = vpow.pop %v204
    %s206 = sld [smem:[#allocation5 + $0x1]]
    %v207 = vstv %s206
    %v208 = vmul.f32 %v76, %v207
    %v209 = vmul.f32 %v77, %v207
    %v210 = vmul.f32 %v78, %v207
    %v211 = vmul.f32 %v79, %v207
    %v212 = vmul.f32 %v80, %v207
    %v213 = vmul.f32 %v81, %v207
    %v214 = vmul.f32 %v82, %v207
    %v215 = vmul.f32 %v83, %v207
    %v216 = vmul.f32 %v84, %v207
    %v217 = vmul.f32 %v85, %v207
    %v218 = vmul.f32 %v86, %v207
    %v219 = vmul.f32 %v87, %v207
    %v220 = vmul.f32 %v88, %v207
    %v221 = vmul.f32 %v89, %v207
    %v222 = vmul.f32 %v90, %v207
    %v223 = vmul.f32 %v91, %v207
    %v224 = vmul.f32 %v92, %v207
    %v225 = vmul.f32 %v93, %v207
    %v226 = vmul.f32 %v94, %v207
    %v227 = vmul.f32 %v95, %v207
    %v228 = vmul.f32 %v96, %v207
    %v229 = vmul.f32 %v97, %v207
    %v230 = vmul.f32 %v98, %v207
    %v231 = vmul.f32 %v99, %v207
    %v232 = vmul.f32 %v100, %v207
    %v233 = vmul.f32 %v101, %v207
    %v234 = vmul.f32 %v102, %v207
    %v235 = vmul.f32 %v103, %v207
    %v236 = vmul.f32 %v104, %v207
    %v237 = vmul.f32 %v105, %v207
    %v238 = vmul.f32 %v106, %v207
    %v239 = vmul.f32 %v107, %v207
    %v240 = vmul.f32 %v208, 1.442695
    %v241 = vpow.pop %v240
    %v242 = vmul.f32 %v209, 1.442695
    %v243 = vpow.pop %v242
    %v244 = vmul.f32 %v210, 1.442695
    %v245 = vpow.pop %v244
    %v246 = vmul.f32 %v211, 1.442695
    %v247 = vpow.pop %v246
    %v248 = vmul.f32 %v212, 1.442695
    %v249 = vpow.pop %v248
    %v250 = vmul.f32 %v213, 1.442695
    %v251 = vpow.pop %v250
    %v252 = vmul.f32 %v214, 1.442695
    %v253 = vpow.pop %v252
    %v254 = vmul.f32 %v215, 1.442695
    %v255 = vpow.pop %v254
    %v256 = vmul.f32 %v216, 1.442695
    %v257 = vpow.pop %v256
    %v258 = vmul.f32 %v217, 1.442695
    %v259 = vpow.pop %v258
    %v260 = vmul.f32 %v218, 1.442695
    %v261 = vpow.pop %v260
    %v262 = vmul.f32 %v219, 1.442695
    %v263 = vpow.pop %v262
    %v264 = vmul.f32 %v220, 1.442695
    %v265 = vpow.pop %v264
    %v266 = vmul.f32 %v221, 1.442695
    %v267 = vpow.pop %v266
    %v268 = vmul.f32 %v222, 1.442695
    %v269 = vpow.pop %v268
    %v270 = vmul.f32 %v223, 1.442695
    %v271 = vpow.pop %v270
    %v272 = vmul.f32 %v224, 1.442695
    %v273 = vpow.pop %v272
    %v274 = vmul.f32 %v225, 1.442695
    %v275 = vpow.pop %v274
    %v276 = vmul.f32 %v226, 1.442695
    %v277 = vpow.pop %v276
    %v278 = vmul.f32 %v227, 1.442695
    %v279 = vpow.pop %v278
    %v280 = vmul.f32 %v228, 1.442695
    %v281 = vpow.pop %v280
    %v282 = vmul.f32 %v229, 1.442695
    %v283 = vpow.pop %v282
    %v284 = vmul.f32 %v230, 1.442695
    %v285 = vpow.pop %v284
    %v286 = vmul.f32 %v231, 1.442695
    %v287 = vpow.pop %v286
    %v288 = vmul.f32 %v232, 1.442695
    %v289 = vpow.pop %v288
    %v290 = vmul.f32 %v233, 1.442695
    %v291 = vpow.pop %v290
    %v292 = vmul.f32 %v234, 1.442695
    %v293 = vpow.pop %v292
    %v294 = vmul.f32 %v235, 1.442695
    %v295 = vpow.pop %v294
    %v296 = vmul.f32 %v236, 1.442695
    %v297 = vpow.pop %v296
    %v298 = vmul.f32 %v237, 1.442695
    %v299 = vpow.pop %v298
    %v300 = vmul.f32 %v238, 1.442695
    %v301 = vpow.pop %v300
    %v302 = vmul.f32 %v239, 1.442695
    %v303 = vpow.pop %v302
    %v304 = vld [vmem:[#allocation2] sm:$0x3]
    %v305 = vld [vmem:[#allocation6] sm:$0xf]
    %307 = vst [vmem:[#allocation1] ss:$4 sm:$0xff] %v305
    %v308 = vld.sshfl [vmem:[#allocation1] sm:$0xff pattern:$0x73625140]
    %v309 = vld.sshfl [vmem:[#allocation1 + $0x8] sm:$0xff pattern:$0x73625140]
    %312 = vmatpush.msra.mxu0 %v173
    %313 = vmatpush.msra.mxu0 %v171
    %314 = vmatpush.msra.mxu0 %v169
    %315 = vmatpush.msra.mxu0 %v167
    %316 = vmatpush.msra.mxu0 %v165
    %317 = vmatpush.msra.mxu0 %v163
    %318 = vmatpush.msra.mxu0 %v161
    %319 = vmatpush.msra.mxu0 %v159
    %320 = vmatpush.msra.mxu0 %v157
    %321 = vmatpush.msra.mxu0 %v155
    %322 = vmatpush.msra.mxu0 %v153
    %323 = vmatpush.msra.mxu0 %v151
    %324 = vmatpush.msra.mxu0 %v149
    %325 = vmatpush.msra.mxu0 %v147
    %326 = vmatpush.msra.mxu0 %v145
    %327 = vmatpush.msra.mxu0 %v143
    %328 = vmatmul.f32.gmra.mxu0 %v308
    %v329 = vpop.f32.mrf.mxu0
    %v330 = vadd.f32 0.0, %v329
    %331 = vdwg.mxu0
    %332 = vmatpush.msra.mxu0 %v205
    %333 = vmatpush.msra.mxu0 %v203
    %334 = vmatpush.msra.mxu0 %v201
    %335 = vmatpush.msra.mxu0 %v199
    %336 = vmatpush.msra.mxu0 %v197
    %337 = vmatpush.msra.mxu0 %v195
    %338 = vmatpush.msra.mxu0 %v193
    %339 = vmatpush.msra.mxu0 %v191
    %340 = vmatpush.msra.mxu0 %v189
    %341 = vmatpush.msra.mxu0 %v187
    %342 = vmatpush.msra.mxu0 %v185
    %343 = vmatpush.msra.mxu0 %v183
    %344 = vmatpush.msra.mxu0 %v181
    %345 = vmatpush.msra.mxu0 %v179
    %346 = vmatpush.msra.mxu0 %v177
    %347 = vmatpush.msra.mxu0 %v175
    %348 = vmatmul.f32.gmra.mxu0 %v309
    %v349 = vpop.f32.mrf.mxu0
    %v350 = vadd.f32 %v330, %v349
    %351 = vdwg.mxu0
    %v352 = vadd.f32 %v304, %v350
    %353 = vst [vmem:[#allocation2] sm:$0x3] %v352
    %v354 = vld [vmem:[#allocation3] sm:$0x3]
    %v355 = vld [vmem:[#allocation9] sm:$0xf]
    %357 = vst [vmem:[#allocation1] ss:$4 sm:$0xff] %v355
    %v358 = vld.sshfl [vmem:[#allocation1] sm:$0xff pattern:$0x73625140]
    %v359 = vld.sshfl [vmem:[#allocation1 + $0x8] sm:$0xff pattern:$0x73625140]
    %362 = vmatpush.msra.mxu0 %v271
    %363 = vmatpush.msra.mxu0 %v269
    %364 = vmatpush.msra.mxu0 %v267
    %365 = vmatpush.msra.mxu0 %v265
    %366 = vmatpush.msra.mxu0 %v263
    %367 = vmatpush.msra.mxu0 %v261
    %368 = vmatpush.msra.mxu0 %v259
    %369 = vmatpush.msra.mxu0 %v257
    %370 = vmatpush.msra.mxu0 %v255
    %371 = vmatpush.msra.mxu0 %v253
    %372 = vmatpush.msra.mxu0 %v251
    %373 = vmatpush.msra.mxu0 %v249
    %374 = vmatpush.msra.mxu0 %v247
    %375 = vmatpush.msra.mxu0 %v245
    %376 = vmatpush.msra.mxu0 %v243
    %377 = vmatpush.msra.mxu0 %v241
    %378 = vmatmul.f32.gmra.mxu0 %v358
    %v379 = vpop.f32.mrf.mxu0
    %v380 = vadd.f32 0.0, %v379
    %381 = vdwg.mxu0
    %382 = vmatpush.msra.mxu0 %v303
    %383 = vmatpush.msra.mxu0 %v301
    %384 = vmatpush.msra.mxu0 %v299
    %385 = vmatpush.msra.mxu0 %v297
    %386 = vmatpush.msra.mxu0 %v295
    %387 = vmatpush.msra.mxu0 %v293
    %388 = vmatpush.msra.mxu0 %v291
    %389 = vmatpush.msra.mxu0 %v289
    %390 = vmatpush.msra.mxu0 %v287
    %391 = vmatpush.msra.mxu0 %v285
    %392 = vmatpush.msra.mxu0 %v283
    %393 = vmatpush.msra.mxu0 %v281
    %394 = vmatpush.msra.mxu0 %v279
    %395 = vmatpush.msra.mxu0 %v277
    %396 = vmatpush.msra.mxu0 %v275
    %397 = vmatpush.msra.mxu0 %v273
    %398 = vmatmul.f32.gmra.mxu0 %v359
    %v399 = vpop.f32.mrf.mxu0
    %v400 = vadd.f32 %v380, %v399
    %401 = vdwg.mxu0
    %v402 = vadd.f32 %v354, %v400
    %403 = vst [vmem:[#allocation3] sm:$0x3] %v402
    // Predicated region
    $region30: #{tpu_custom_call.1} parent=1 // pred_check
      %p404 = pneg %p70
    $region31: #{tpu_custom_call.1} parent=1 // pred_check_branch
      %406 = sbr.rel (%p404) target = $region33
    $region32: #{tpu_custom_call.1} parent=1 // pred_region
      %v407 = vld [vmem:[#allocation2] sm:$0x3]
      %408 = vst [vmem:[#allocation12] sm:$0x3] %v407
      %v409 = vld [vmem:[#allocation3] sm:$0x3]
      %v410 = vmul.f32 %v409, 1.442695
      %v411 = vpow.pop %v410
      %vm412 = vcmp.lt.f32.partialorder %v411, 1000.0
      %v413 = vadd.f32 %v411, 1.0
      %v414 = vlog2.pop %v413
      %v415 = vmul.f32 %v414, 0.6931472
      %v416 = vmul.f32 -0.5, %v411
      %v417 = vadd.f32 %v416, 1.0
      %v418 = vmul.f32 %v417, %v411
      %v419 = vand.u32 2147483647, %v411
      %vm420 = vcmp.lt.f32.partialorder %v419, 0.0004427343
      %v421 = vsel %vm420, %v418, %v415
      %v422 = vsel %vm412, %v421, %v409
      %v423 = vmul.f32 %v422, 0.9
      %v424 = vadd.f32 %v423, 0.01
      %425 = vst [vmem:[#allocation13] sm:$0x3] %v424
    $region33: #{tpu_custom_call.1} parent=1 // pred_fallthru
      _
    // Predicated region
    $region34: #{tpu_custom_call.1} parent=1 // pred_check
      _
    $region35: #{tpu_custom_call.1} parent=1 // pred_check_branch
      %427 = sbr.rel (0) target = $region37
    $region36: #{tpu_custom_call.1} parent=1 // pred_region
      %429 = vsyncadd [#allocation8], 0
      %s431 = sshll.u32 [#allocation12], 4
      %s432 = int_to_ptr.vmem [resolvable:$true] %s431
      %s433 = sshll.u32 %s4, 4
      %s434 = int_to_ptr.hbm [resolvable:$true] %s433
      %436 = dma.vmem_to_hbm [thread:$0]  %s432, 32, %s434, [#allocation8]
    $region37: #{tpu_custom_call.1} parent=1 // pred_fallthru
      _
    // Predicated region
    $region38: #{tpu_custom_call.1} parent=1 // pred_check
      _
    $region39: #{tpu_custom_call.1} parent=1 // pred_check_branch
      %438 = sbr.rel (0) target = $region41
    $region40: #{tpu_custom_call.1} parent=1 // pred_region
      %440 = vsyncadd [#allocation14], 0
      %s442 = sshll.u32 [#allocation13], 4
      %s443 = int_to_ptr.vmem [resolvable:$true] %s442
      %s444 = sshll.u32 %s5, 4
      %s445 = int_to_ptr.hbm [resolvable:$true] %s444
      %447 = dma.vmem_to_hbm [thread:$0]  %s443, 32, %s445, [#allocation14]
    $region41: #{tpu_custom_call.1} parent=1 // pred_fallthru
      _
    // Predicated region
    $region42: #{tpu_custom_call.1} parent=1 // pred_check
      _
    $region43: #{tpu_custom_call.1} parent=1 // pred_check_branch
      %449 = sbr.rel (0) target = $region45
    $region44: #{tpu_custom_call.1} parent=1 // pred_region
      %451 = dma.done [#allocation8], 32
    $region45: #{tpu_custom_call.1} parent=1 // pred_fallthru
      _
    // Predicated region
    $region46: #{tpu_custom_call.1} parent=1 // pred_check
      _
    $region47: #{tpu_custom_call.1} parent=1 // pred_check_branch
      %453 = sbr.rel (0) target = $region49
    $region48: #{tpu_custom_call.1} parent=1 // pred_region
      %455 = dma.done [#allocation14], 32
    $region49: #{tpu_custom_call.1} parent=1 // pred_fallthru
      _
    %456 = vsyncpa [#allocation7], 1
    %457 = vsyncpa [#allocation10], 1
    %458 = vsyncpa [#allocation8], 1
    %459 = vsyncpa [#allocation14], 1

</llo_original>
